<compile_context>
chip_gen: v7x
topology: tpu7x:2x2x1
jax: 0.10.0
libtpu: 0.0.40
codegen_flags: <defaults>
</compile_context>

<pallas_src>
import functools

import jax
import jax.numpy as jnp
from jax.experimental import pallas as pl
from jax.experimental.pallas import tpu as pltpu


def _conv_bias_relu_kernel(x_ref, w_ref, b_ref, o_ref, *, kh, kw, wp, oh):
    """Fused zero-pad conv (stride 1) + bias + ReLU for one batch element.

    x_ref: (1, C, L)            padded image, rows flattened,
                                L = (Hp + extra) * Wp, bf16
    w_ref: (OC, KH*KW*C)        folded weights, tap-major / channel-minor, bf16
    b_ref: (OC, 1)              bias, f32
    o_ref: (1, OC, OH*Wp)       wide output (seam columns included), f32
    """
    wide = oh * wp                              # stride-1 "wide" output width

    # Build the stacked RHS (KH*KW*C, wide) in VMEM: one shifted lane window of
    # the flattened padded image per tap, sublane-stacked so all taps fold into
    # a single MXU contraction (K = KH*KW*C) instead of 9 dots + 8 VALU adds.
    views = []
    for t in range(kh * kw):                    # static unroll (9 taps)
        di, dj = divmod(t, kw)
        start = di * wp + dj
        views.append(x_ref[0, :, start:start + wide])        # (C, wide) bf16
    slab = jnp.concatenate(views, axis=0)                    # (KH*KW*C, wide)

    acc = jnp.dot(w_ref[...], slab,                          # (OC, wide) f32
                  preferred_element_type=jnp.float32)
    acc = jnp.maximum(acc + b_ref[...], 0.0)                 # bias + ReLU (f32)

    # Single wide, lane-dense, unmasked store.  Seam columns (between output
    # rows) hold garbage; the wrapper drops them with a cheap slice.
    o_ref[0, :, :] = acc.astype(o_ref.dtype)


def conv2d_block_forward(x, weight, bias, *, stride=1, padding=0,
                         compute_dtype=jnp.bfloat16):
    """Conv2dBlock forward: pad_type='zero', norm='none', activation='relu'.

    x:      (N, C, H, W)    float32, NCHW (PyTorch convention)
    weight: (OC, C, KH, KW) PyTorch OIHW layout
    bias:   (OC,)
    returns (N, OC, OH, OW) x.dtype, NCHW

    Note: compute_dtype=bf16 is an intentional accuracy tradeoff vs PyTorch's
    f32 Conv2d (accumulation / bias / ReLU stay f32).  Pass
    compute_dtype=jnp.float32 for f32-exact matmul inputs.
    """
    n, c, h, w = x.shape
    oc, c_in, kh, kw = weight.shape
    assert c_in == c
    if stride != 1:
        # TODO(synk): stride > 1 needs strided lane gathers in the fused path.
        raise NotImplementedError("fused Conv2dBlock kernel supports stride=1")

    hp, wp = h + 2 * padding, w + 2 * padding
    oh, ow = hp - kh + 1, wp - kw + 1
    assert oh > 0 and ow > 0
    assert kw - 1 <= wp, "degenerate config: kernel wider than padded image + 1"

    # Zero pad (nn.ZeroPad2d) + one extra bottom row so the last shifted lane
    # window stays in bounds (it only feeds never-used seam columns).
    extra = 1 if kw > 1 else 0
    x_pad = jnp.pad(
        x, ((0, 0), (0, 0), (padding, padding + extra), (padding, padding)))
    # TODO(synk): for large images fold this pad+cast into the kernel (halo DMA
    #             with memory_space=pl.ANY) to avoid the extra input HBM pass.
    x_pad = x_pad.astype(compute_dtype)
    ell = (hp + extra) * wp
    x2d = x_pad.reshape(n, c, ell)               # free (row-major metadata)

    # Folded weight matrix matching the in-kernel stacking order:
    # column index = (di*KW + dj)*C + c  ->  weight[oc, c, di, dj].
    w_folded = (jnp.transpose(weight, (0, 2, 3, 1))
                .reshape(oc, kh * kw * c)
                .astype(compute_dtype))
    b_col = bias.reshape(oc, 1).astype(jnp.float32)

    wide = oh * wp
    kernel = functools.partial(_conv_bias_relu_kernel,
                               kh=kh, kw=kw, wp=wp, oh=oh)
    out = pl.pallas_call(
        kernel,
        out_shape=jax.ShapeDtypeStruct((n, oc, wide), x.dtype),
        grid_spec=pltpu.PrefetchScalarGridSpec(
            num_scalar_prefetch=0,
            grid=(n,),
            in_specs=[
                pl.BlockSpec((1, c, ell), lambda i: (i, 0, 0)),
                pl.BlockSpec((oc, kh * kw * c), lambda i: (0, 0)),
                pl.BlockSpec((oc, 1), lambda i: (0, 0)),
            ],
            out_specs=pl.BlockSpec((1, oc, wide), lambda i: (i, 0, 0)),
        ),
        compiler_params=pltpu.CompilerParams(
            dimension_semantics=("parallel",)),
    )(x2d, w_folded, b_col)

    # Drop the seam columns outside the kernel (tiny output-sized slice), then
    # the final shape is exact NCHW.
    out = out.reshape(n, oc, oh, wp)[..., :ow]
    return out


if __name__ == "__main__":
    # Module config: Conv2dBlock(input_dim=4, output_dim=8, kernel_size=3,
    #                            stride=1, padding=1, norm='none',
    #                            activation='relu', pad_type='zero')
    N, C, H, W = 2, 4, 16, 16
    OC, KH, KW = 8, 3, 3
    STRIDE, PADDING = 1, 1

    key = jax.random.PRNGKey(0)
    kx, kw_, kb = jax.random.split(key, 3)

    x = jax.random.normal(kx, (N, C, H, W), dtype=jnp.float32)
    # Deterministic Kaiming-uniform-like init (same bound PyTorch Conv2d uses).
    fan_in = C * KH * KW
    bound = 1.0 / (fan_in ** 0.5)
    weight = jax.random.uniform(kw_, (OC, C, KH, KW), jnp.float32, -bound, bound)
    bias = jax.random.uniform(kb, (OC,), jnp.float32, -bound, bound)

    fwd = jax.jit(functools.partial(conv2d_block_forward,
                                    stride=STRIDE, padding=PADDING))
    y = fwd(x, weight, bias)
    jax.block_until_ready(y)

    # Silent correctness check: XLA conv on the same bf16-rounded inputs
    # (kernel multiplies in bf16, accumulates / adds bias / ReLUs in f32).
    xq = x.astype(jnp.bfloat16).astype(jnp.float32)
    wq = weight.astype(jnp.bfloat16).astype(jnp.float32)
    ref = jax.lax.conv_general_dilated(
        xq, wq, window_strides=(STRIDE, STRIDE),
        padding=((PADDING, PADDING), (PADDING, PADDING)),
        dimension_numbers=("NCHW", "OIHW", "NCHW"),
        precision=jax.lax.Precision.HIGHEST)
    ref = jnp.maximum(ref + bias.reshape(1, OC, 1, 1), 0.0)
    assert y.shape == (N, OC, H, W)
    assert jnp.allclose(y, ref, atol=1e-3, rtol=1e-3)

    print("KERNEL_OK")
</pallas_src>

<mosaic_0001>
module attributes {stable_mosaic.version = 11 : i64} {
  func.func @_conv_bias_relu_kernel(%arg0: i32, %arg1: memref<1x4x342xbf16, #tpu.memory_space<vmem>>, %arg2: memref<8x36xbf16, #tpu.memory_space<vmem>>, %arg3: memref<8x1xf32, #tpu.memory_space<vmem>>, %arg4: memref<1x8x288xf32, #tpu.memory_space<vmem>>) attributes {dimension_semantics = [#tpu.dimension_semantics<parallel>], iteration_bounds = array<i64: 2>, scalar_prefetch = 0 : i64, scratch_operands = 0 : i64, tpu.core_type = #tpu.core_type<tc>, window_params = [{transform_indices = @transform_0, window_bounds = array<i64: 1, 4, 342>}, {pipeline_mode = #tpu.pipeline_mode<synchronous>, transform_indices = @transform_1, window_bounds = array<i64: 8, 36>}, {pipeline_mode = #tpu.pipeline_mode<synchronous>, transform_indices = @transform_2, window_bounds = array<i64: 8, 1>}, {transform_indices = @transform_3, window_bounds = array<i64: 1, 8, 288>}]} {
    %c0 = arith.constant 0 : index
    %c0_0 = arith.constant 0 : index
    %c0_1 = arith.constant 0 : index
    %0 = vector.load %arg1[%c0, %c0_0, %c0_1] : memref<1x4x342xbf16, #tpu.memory_space<vmem>>, vector<1x4x288xbf16>
    %1 = vector.shape_cast %0 : vector<1x4x288xbf16> to vector<4x288xbf16>
    %c0_2 = arith.constant 0 : index
    %c0_3 = arith.constant 0 : index
    %c1 = arith.constant 1 : index
    %2 = vector.load %arg1[%c0_2, %c0_3, %c1] : memref<1x4x342xbf16, #tpu.memory_space<vmem>>, vector<1x4x288xbf16>
    %3 = vector.shape_cast %2 : vector<1x4x288xbf16> to vector<4x288xbf16>
    %c0_4 = arith.constant 0 : index
    %c0_5 = arith.constant 0 : index
    %c2 = arith.constant 2 : index
    %4 = vector.load %arg1[%c0_4, %c0_5, %c2] : memref<1x4x342xbf16, #tpu.memory_space<vmem>>, vector<1x4x288xbf16>
    %5 = vector.shape_cast %4 : vector<1x4x288xbf16> to vector<4x288xbf16>
    %c0_6 = arith.constant 0 : index
    %c0_7 = arith.constant 0 : index
    %c18 = arith.constant 18 : index
    %6 = vector.load %arg1[%c0_6, %c0_7, %c18] : memref<1x4x342xbf16, #tpu.memory_space<vmem>>, vector<1x4x288xbf16>
    %7 = vector.shape_cast %6 : vector<1x4x288xbf16> to vector<4x288xbf16>
    %c0_8 = arith.constant 0 : index
    %c0_9 = arith.constant 0 : index
    %c19 = arith.constant 19 : index
    %8 = vector.load %arg1[%c0_8, %c0_9, %c19] : memref<1x4x342xbf16, #tpu.memory_space<vmem>>, vector<1x4x288xbf16>
    %9 = vector.shape_cast %8 : vector<1x4x288xbf16> to vector<4x288xbf16>
    %c0_10 = arith.constant 0 : index
    %c0_11 = arith.constant 0 : index
    %c20 = arith.constant 20 : index
    %10 = vector.load %arg1[%c0_10, %c0_11, %c20] : memref<1x4x342xbf16, #tpu.memory_space<vmem>>, vector<1x4x288xbf16>
    %11 = vector.shape_cast %10 : vector<1x4x288xbf16> to vector<4x288xbf16>
    %c0_12 = arith.constant 0 : index
    %c0_13 = arith.constant 0 : index
    %c36 = arith.constant 36 : index
    %12 = vector.load %arg1[%c0_12, %c0_13, %c36] : memref<1x4x342xbf16, #tpu.memory_space<vmem>>, vector<1x4x288xbf16>
    %13 = vector.shape_cast %12 : vector<1x4x288xbf16> to vector<4x288xbf16>
    %c0_14 = arith.constant 0 : index
    %c0_15 = arith.constant 0 : index
    %c37 = arith.constant 37 : index
    %14 = vector.load %arg1[%c0_14, %c0_15, %c37] : memref<1x4x342xbf16, #tpu.memory_space<vmem>>, vector<1x4x288xbf16>
    %15 = vector.shape_cast %14 : vector<1x4x288xbf16> to vector<4x288xbf16>
    %c0_16 = arith.constant 0 : index
    %c0_17 = arith.constant 0 : index
    %c38 = arith.constant 38 : index
    %16 = vector.load %arg1[%c0_16, %c0_17, %c38] : memref<1x4x342xbf16, #tpu.memory_space<vmem>>, vector<1x4x288xbf16>
    %17 = vector.shape_cast %16 : vector<1x4x288xbf16> to vector<4x288xbf16>
    %18 = tpu.concatenate %1, %3, %5, %7, %9, %11, %13, %15, %17 in 0 : vector<4x288xbf16>, vector<4x288xbf16>, vector<4x288xbf16>, vector<4x288xbf16>, vector<4x288xbf16>, vector<4x288xbf16>, vector<4x288xbf16>, vector<4x288xbf16>, vector<4x288xbf16> -> vector<36x288xbf16>
    %c0_18 = arith.constant 0 : index
    %c0_19 = arith.constant 0 : index
    %19 = vector.load %arg2[%c0_18, %c0_19] : memref<8x36xbf16, #tpu.memory_space<vmem>>, vector<8x36xbf16>
    %cst = arith.constant dense<0.000000e+00> : vector<8x288xf32>
    %20 = tpu.matmul %19, %18, %cst {dimension_numbers = #tpu.dot_dimension_numbers<[1], [0], [0], [1], [0, 0, 1, 1], [], []>} : vector<8x36xbf16>, vector<36x288xbf16>, vector<8x288xf32> -> vector<8x288xf32>
    %c0_20 = arith.constant 0 : index
    %c0_21 = arith.constant 0 : index
    %21 = vector.load %arg3[%c0_20, %c0_21] : memref<8x1xf32, #tpu.memory_space<vmem>>, vector<8x1xf32>
    %22 = vector.broadcast %21 : vector<8x1xf32> to vector<8x288xf32>
    %23 = arith.addf %20, %22 : vector<8x288xf32>
    %cst_22 = arith.constant 0.000000e+00 : f32
    %24 = vector.broadcast %cst_22 : f32 to vector<8x288xf32>
    %25 = arith.maximumf %23, %24 : vector<8x288xf32>
    %c0_23 = arith.constant 0 : index
    %c0_24 = arith.constant 0 : index
    %c0_25 = arith.constant 0 : index
    %26 = vector.load %arg4[%c0_23, %c0_24, %c0_25] : memref<1x8x288xf32, #tpu.memory_space<vmem>>, vector<1x8x288xf32>
    %27 = vector.shape_cast %26 : vector<1x8x288xf32> to vector<8x288xf32>
    %28 = vector.shape_cast %25 : vector<8x288xf32> to vector<1x8x288xf32>
    tpu.vector_store %arg4[%c0_23, %c0_24, %c0_25], %28 {strides = array<i32>} : memref<1x8x288xf32, #tpu.memory_space<vmem>>, vector<1x8x288xf32>,
    return
  }
  func.func @transform_0(%arg0: i32) -> (i32, i32, i32) {
    %c0_i32 = arith.constant 0 : i32
    %c0_i32_0 = arith.constant 0 : i32
    %c0_i32_1 = arith.constant 0 : i32
    return %arg0, %c0_i32, %c0_i32_0 : i32, i32, i32
  }
  func.func @transform_1(%arg0: i32) -> (i32, i32) {
    %c0_i32 = arith.constant 0 : i32
    %c0_i32_0 = arith.constant 0 : i32
    %c0_i32_1 = arith.constant 0 : i32
    return %c0_i32, %c0_i32_0 : i32, i32
  }
  func.func @transform_2(%arg0: i32) -> (i32, i32) {
    %c0_i32 = arith.constant 0 : i32
    %c0_i32_0 = arith.constant 0 : i32
    %c0_i32_1 = arith.constant 0 : i32
    return %c0_i32, %c0_i32_0 : i32, i32
  }
  func.func @transform_3(%arg0: i32) -> (i32, i32, i32) {
    %c0_i32 = arith.constant 0 : i32
    %c0_i32_0 = arith.constant 0 : i32
    %c0_i32_1 = arith.constant 0 : i32
    return %arg0, %c0_i32, %c0_i32_0 : i32, i32, i32
  }
}

</mosaic_0001>

<llo_original>
// kernel: conv2d_block_forward.1
$region0: #{conv2d_block_forward.1}
  #allocation0 [shape = 'u32[]', space=smem, size = 0x4, offset = 0x4, fixed_abs, tag = 'smem constant byte address 0x4 - core index']
  #allocation1 [shape = 'u32[144,128]{1,0:T(1,128)}', space=vmem, size = 0x12000, scoped, tag = 'internal scratch']
  %s0 = inlined_call_operand.vmem [shape: bf16[2,4,342], index: 0, kind: input, shape index: {}]
  %s1 = inlined_call_operand.vmem [shape: bf16[8,36], index: 1, kind: input, shape index: {}]
  %s2 = inlined_call_operand.vmem [shape: f32[8,1], index: 2, kind: input, shape index: {}]
  %s3 = inlined_call_operand.vmem [shape: f32[2,8,288], index: 3, kind: output, shape index: {}]
  %s4 = sld [smem:[#allocation0]]
  $region45: #{conv2d_block_forward.1} parent=0
    _
  %s6 = ssub.s32 1, %s4
  %s7 = scalar_select 0, %s6, %s4
  loop: start=0, step=1, limit=4
  $region2: #{conv2d_block_forward.1} parent=0 // loop_pre_header
    _
  $region3: #{conv2d_block_forward.1} parent=0 // loop_header
    %s9 = sphi 0, %s13
    %p10 = scmp.ge.s32.totalorder %s9, 4
    %s19 = sphi 0, %s21
    %s22 = sphi 0, %s19
    %s23 = sphi 0, %s22
    %s39 = sphi 0, %s23
    %s43 = sphi 0, %s43
    %s45 = sphi 0, %s43
    %s46 = sphi 0, %s45
    %s60 = sphi 0, %s46
    %s64 = sphi 0, %s64
    %s66 = sphi 0, %s64
    %s67 = sphi 0, %s66
    %s81 = sphi 0, %s67
    %s87 = sphi 0, %s89
    %s90 = sphi 0, %s87
    %s91 = sphi 0, %s90
    %s107 = sphi 0, %s91
  $region4: #{conv2d_block_forward.1} parent=0 // loop_header_branch
    %12 = sbr.rel (%p10) target = $region8
  $region5: #{conv2d_block_forward.1} parent=0 // loop_body
    %s14 = ssub.s32 %s9, 1
    %s15 = ssub.s32 %s9, 2
    %s16 = sadd.s32 %s9, 1
    %s17 = ssub.s32 %s9, %s16
    %p18 = scmp.eq.s32.totalorder %s17, 0
    %s20 = sadd.s32 %s19, 1
    %s21 = scalar_select %p18, %s19, %s20
    %p24 = pneg %p18
    %p25 = scmp.eq.s32.totalorder %s9, 1
    %p26 = por %p24, %p25
    %p27 = scmp.ne.s32.totalorder %s19, %s22
    %p28 = scmp.eq.s32.totalorder %s9, 0
    %p29 = por %p27, %p28
    %p30 = scmp.ne.s32.totalorder %s19, %s22
    %p31 = scmp.eq.s32.totalorder %s14, 1
    %p32 = por %p30, %p31
    %p33 = scmp.ne.s32.totalorder %s22, %s23
    %p34 = scmp.eq.s32.totalorder %s14, 0
    %p35 = por %p33, %p34
    %p36 = scmp.ne.s32.totalorder %s22, %s23
    %p37 = scmp.eq.s32.totalorder %s15, 1
    %p38 = por %p36, %p37
    %p40 = scmp.ne.s32.totalorder %s23, %s39
    %p41 = scmp.eq.s32.totalorder %s15, 0
    %p42 = por %p40, %p41
    %s44 = sadd.s32 %s43, 1
    %p47 = scmp.eq.s32.totalorder %s9, 1
    %p48 = scmp.ne.s32.totalorder %s43, %s45
    %p49 = scmp.eq.s32.totalorder %s9, 0
    %p50 = por %p48, %p49
    %p51 = scmp.ne.s32.totalorder %s43, %s45
    %p52 = scmp.eq.s32.totalorder %s14, 1
    %p53 = por %p51, %p52
    %p54 = scmp.ne.s32.totalorder %s45, %s46
    %p55 = scmp.eq.s32.totalorder %s14, 0
    %p56 = por %p54, %p55
    %p57 = scmp.ne.s32.totalorder %s45, %s46
    %p58 = scmp.eq.s32.totalorder %s15, 1
    %p59 = por %p57, %p58
    %p61 = scmp.ne.s32.totalorder %s46, %s60
    %p62 = scmp.eq.s32.totalorder %s15, 0
    %p63 = por %p61, %p62
    %s65 = sadd.s32 %s64, 1
    %p68 = scmp.eq.s32.totalorder %s9, 1
    %p69 = scmp.ne.s32.totalorder %s64, %s66
    %p70 = scmp.eq.s32.totalorder %s9, 0
    %p71 = por %p69, %p70
    %p72 = scmp.ne.s32.totalorder %s64, %s66
    %p73 = scmp.eq.s32.totalorder %s14, 1
    %p74 = por %p72, %p73
    %p75 = scmp.ne.s32.totalorder %s66, %s67
    %p76 = scmp.eq.s32.totalorder %s14, 0
    %p77 = por %p75, %p76
    %p78 = scmp.ne.s32.totalorder %s66, %s67
    %p79 = scmp.eq.s32.totalorder %s15, 1
    %p80 = por %p78, %p79
    %p82 = scmp.ne.s32.totalorder %s67, %s81
    %p83 = scmp.eq.s32.totalorder %s15, 0
    %p84 = por %p82, %p83
    %s85 = ssub.s32 %s9, %s16
    %p86 = scmp.eq.s32.totalorder %s85, 0
    %s88 = sadd.s32 %s87, 1
    %s89 = scalar_select %p86, %s87, %s88
    %p92 = pneg %p86
    %p93 = scmp.eq.s32.totalorder %s9, 1
    %p94 = por %p92, %p93
    %p95 = scmp.ne.s32.totalorder %s87, %s90
    %p96 = scmp.eq.s32.totalorder %s9, 0
    %p97 = por %p95, %p96
    %p98 = scmp.ne.s32.totalorder %s87, %s90
    %p99 = scmp.eq.s32.totalorder %s14, 1
    %p100 = por %p98, %p99
    %p101 = scmp.ne.s32.totalorder %s90, %s91
    %p102 = scmp.eq.s32.totalorder %s14, 0
    %p103 = por %p101, %p102
    %p104 = scmp.ne.s32.totalorder %s90, %s91
    %p105 = scmp.eq.s32.totalorder %s15, 1
    %p106 = por %p104, %p105
    %p108 = scmp.ne.s32.totalorder %s91, %s107
    %p109 = scmp.eq.s32.totalorder %s15, 0
    %p110 = por %p108, %p109
    %p111 = scmp.le.s32.totalorder 1, %s9
    %p112 = scmp.lt.s32.totalorder %s9, 3
    %p113 = pnand %p111, %p112
    %p114 = pneg %p113
    // Predicated region
    $region9: #{conv2d_block_forward.1} parent=5 // pred_check
      _
    $region10: #{conv2d_block_forward.1} parent=5 // pred_check_branch
      %116 = sbr.rel (%p113) target = $region12
    $region11: #{conv2d_block_forward.1} parent=5 // pred_region
      %s117 = ssub.s32 %s9, 1
      // Predicated region
      $region13: #{conv2d_block_forward.1} parent=11 // pred_check
        %p118 = pneg %p56
      $region14: #{conv2d_block_forward.1} parent=11 // pred_check_branch
        %120 = sbr.rel (%p118) target = $region16
      $region15: #{conv2d_block_forward.1} parent=11 // pred_region
        _
      $region16: #{conv2d_block_forward.1} parent=11 // pred_fallthru
        _
      // Predicated region
      $region17: #{conv2d_block_forward.1} parent=11 // pred_check
        %p121 = pneg %p77
      $region18: #{conv2d_block_forward.1} parent=11 // pred_check_branch
        %123 = sbr.rel (%p121) target = $region20
      $region19: #{conv2d_block_forward.1} parent=11 // pred_region
        _
      $region20: #{conv2d_block_forward.1} parent=11 // pred_fallthru
        _
    $region12: #{conv2d_block_forward.1} parent=5 // pred_fallthru
      _
    %p124 = scmp.lt.s32.totalorder %s9, 2
    // Predicated region
    $region21: #{conv2d_block_forward.1} parent=5 // pred_check
      %p125 = pneg %p124
    $region22: #{conv2d_block_forward.1} parent=5 // pred_check_branch
      %127 = sbr.rel (%p125) target = $region24
    $region23: #{conv2d_block_forward.1} parent=5 // pred_region
      // Predicated region
      $region25: #{conv2d_block_forward.1} parent=23 // pred_check
        %p128 = pneg %p29
      $region26: #{conv2d_block_forward.1} parent=23 // pred_check_branch
        %130 = sbr.rel (%p128) target = $region28
      $region27: #{conv2d_block_forward.1} parent=23 // pred_region
        %p131 = scmp.lt.s32.totalorder %s9, 1
        %s132 = scalar_select %p131, %s9, 1
        %s133 = smul.addr %s132, 3
        %s134 = smul.addr %s133, 2
        %s135 = scalar_lea.vmem %s0, %s134
      $region28: #{conv2d_block_forward.1} parent=23 // pred_fallthru
        _
    $region24: #{conv2d_block_forward.1} parent=5 // pred_fallthru
      _
    %p136 = scmp.le.s32.totalorder 1, %s9
    %p137 = scmp.lt.s32.totalorder %s9, 3
    %p138 = pnand %p136, %p137
    %p139 = pneg %p138
    // Predicated region
    $region29: #{conv2d_block_forward.1} parent=5 // pred_check
      _
    $region30: #{conv2d_block_forward.1} parent=5 // pred_check_branch
      %141 = sbr.rel (%p138) target = $region32
    $region31: #{conv2d_block_forward.1} parent=5 // pred_region
      %s142 = ssub.s32 %s9, 1
      %p143 = scmp.lt.s32.totalorder %s14, 1
      %s144 = scalar_select %p143, %s14, 1
      %s145 = smul.addr %s144, 3
      %s146 = smul.addr %s145, 2
      %s147 = scalar_lea.vmem %s0, %s146
      %p148 = pneg %p35
      %p149 = pneg %p32
      %p150 = pneg %p56
      %p151 = pneg %p53
      %p152 = pneg %p77
      %p153 = pneg %p74
      %p154 = pneg %p103
      %p155 = pneg %p100
      %p156 = scmp.lt.s32.totalorder %s14, 1
      %s157 = scalar_select %p156, %s14, 1
      %s158 = smul.addr %s157, 3
      %s159 = smul.addr %s158, 8
      %s160 = scalar_lea.vmem %s3, %s159
      %p161 = scmp.lt.s32.totalorder %s14, 1
      %s162 = scalar_select %p161, %s14, 1
      %s163 = smul.addr %s162, 3
      %s164 = smul.addr %s163, 2
      %s165 = scalar_lea.vmem %s0, %s164
      %p166 = scmp.lt.s32.totalorder %s14, 1
      %s167 = scalar_select %p166, %s14, 1
      %s168 = smul.addr %s167, 3
      %s169 = smul.addr %s168, 8
      %s170 = scalar_lea.vmem %s3, %s169
      %v172 = vld [vmem:[%s165] sm:$0x3f]
      %v174 = vcombine.high %v172, %v172
      %v176 = vunpack.c.l.s4 1983009808
      %v177 = vunpack.c.0.s8 %v176
      %v178 = vlaneseq
      %v179 = vshrl.u32 %v178, 7
      %v180 = vsub.s32 %v177, %v179
      %v181 = vrot.slane %v172, %v180
      %v183 = vunpack.c.l.s4 1983009808
      %v184 = vunpack.c.0.s8 %v183
      %v185 = vlaneseq
      %v186 = vshrl.u32 %v185, 7
      %v187 = vsub.s32 %v184, %v186
      %v188 = vrot.slane %v174, %v187
      %v189 = vcombine.high %v181, %v181
      %v190 = vcombine.low %v172, %v172
      %v192 = vunpack.c.l.s4 1983009808
      %v193 = vunpack.c.0.s8 %v192
      %v194 = vlaneseq
      %v195 = vshrl.u32 %v194, 7
      %v196 = vsub.s32 %v193, %v195
      %v197 = vrot.slane %v190, %v196
      %v198 = vcombine.high %v197, %v197
      %199 = vrot.lane.b32.xlu0 %v197, 127
      %v200 = vpop.permute.xlu0 %199
      %201 = vrot.lane.b32.xlu0 %v198, 127
      %v202 = vpop.permute.xlu0 %201
      %203 = vrot.lane.b32.xlu0 %v181, 127
      %v204 = vpop.permute.xlu0 %203
      %vm205 = vcmask 1039360
      %v206 = vsel %vm205, %v200, %v202
      %v207 = vsel %vm205, %v202, %v204
      %v208 = vcombine.low %v181, %v181
      %v209 = vcombine.low %v188, %v188
      %210 = vrot.lane.b32.xlu0 %v208, 126
      %v211 = vpop.permute.xlu0 %210
      %212 = vrot.lane.b32.xlu0 %v181, 126
      %v213 = vpop.permute.xlu0 %212
      %214 = vrot.lane.b32.xlu0 %v209, 126
      %v215 = vpop.permute.xlu0 %214
      %vm216 = vcmask 1031168
      %v217 = vsel %vm216, %v211, %v213
      %v218 = vsel %vm216, %v213, %v215
      %v219 = vcombine.low %v197, %v197
      %220 = vrot.lane.b32.xlu0 %v219, 110
      %v221 = vpop.permute.xlu0 %220
      %222 = vrot.lane.b32.xlu0 %v197, 110
      %v223 = vpop.permute.xlu0 %222
      %224 = vrot.lane.b32.xlu0 %v208, 110
      %v225 = vpop.permute.xlu0 %224
      %vm226 = vcmask 900096
      %v227 = vsel %vm226, %v221, %v223
      %v228 = vsel %vm226, %v223, %v225
      %229 = vrot.lane.b32.xlu0 %v181, 109
      %v230 = vpop.permute.xlu0 %229
      %231 = vrot.lane.b32.xlu0 %v189, 109
      %v232 = vpop.permute.xlu0 %231
      %233 = vrot.lane.b32.xlu0 %v188, 109
      %v234 = vpop.permute.xlu0 %233
      %vm235 = vcmask 891904
      %v236 = vsel %vm235, %v230, %v232
      %v237 = vsel %vm235, %v232, %v234
      %238 = vrot.lane.b32.xlu0 %v197, 108
      %v239 = vpop.permute.xlu0 %238
      %240 = vrot.lane.b32.xlu0 %v198, 108
      %v241 = vpop.permute.xlu0 %240
      %242 = vrot.lane.b32.xlu0 %v181, 108
      %v243 = vpop.permute.xlu0 %242
      %vm244 = vcmask 883712
      %v245 = vsel %vm244, %v239, %v241
      %v246 = vsel %vm244, %v241, %v243
      %247 = vrot.lane.b32.xlu0 %v208, 92
      %v248 = vpop.permute.xlu0 %247
      %249 = vrot.lane.b32.xlu0 %v181, 92
      %v250 = vpop.permute.xlu0 %249
      %251 = vrot.lane.b32.xlu0 %v209, 92
      %v252 = vpop.permute.xlu0 %251
      %vm253 = vcmask 752640
      %v254 = vsel %vm253, %v248, %v250
      %v255 = vsel %vm253, %v250, %v252
      %256 = vrot.lane.b32.xlu0 %v219, 91
      %v257 = vpop.permute.xlu0 %256
      %258 = vrot.lane.b32.xlu0 %v197, 91
      %v259 = vpop.permute.xlu0 %258
      %260 = vrot.lane.b32.xlu0 %v208, 91
      %v261 = vpop.permute.xlu0 %260
      %vm262 = vcmask 744448
      %v263 = vsel %vm262, %v257, %v259
      %v264 = vsel %vm262, %v259, %v261
      %265 = vrot.lane.b32.xlu0 %v181, 90
      %v266 = vpop.permute.xlu0 %265
      %267 = vrot.lane.b32.xlu0 %v189, 90
      %v268 = vpop.permute.xlu0 %267
      %269 = vrot.lane.b32.xlu0 %v188, 90
      %v270 = vpop.permute.xlu0 %269
      %vm271 = vcmask 736256
      %v272 = vsel %vm271, %v266, %v268
      %v273 = vsel %vm271, %v268, %v270
      %vm274 = vcmask 1041408
      %v277 = vsel %vm274, %v181, %v206
      %v280 = vsel %vm274, %v189, %v207
      %v283 = vsel %vm274, %v188, %v204
      %vm284 = vcmask 1043456
      %v286 = vsel %vm284, %v277, %v217
      %v288 = vsel %vm284, %v280, %v218
      %v290 = vsel %vm284, %v283, %v215
      %vm291 = vcmask 1045504
      %v293 = vsel %vm291, %v286, %v227
      %v296 = vsel %vm291, %v288, %v228
      %v299 = vsel %vm291, %v290, %v225
      %v303 = vsel %vm274, %v236, %v245
      %v306 = vsel %vm274, %v237, %v246
      %v309 = vsel %vm274, %v234, %v243
      %v311 = vsel %vm284, %v303, %v254
      %v313 = vsel %vm284, %v306, %v255
      %v315 = vsel %vm284, %v309, %v252
      %v317 = vsel %vm291, %v311, %v263
      %v320 = vsel %vm291, %v313, %v264
      %v323 = vsel %vm291, %v315, %v261
      %v325 = vld [vmem:[%s1] sm:$0xf]
      %v326 = vld [vmem:[%s2] sm:$0xff]
      %328 = vset.pattern.permute.xlu0 0
      %329 = vperm.xlu0 %328, %v326
      %v330 = vpop.permute.xlu0 %329
      %vm332 = vcmask 293888
      %v334 = vsel %vm332, %v325, 0
      %v337 = vsel %vm274, %v272, 0
      %v340 = vsel %vm274, %v273, 0
      %v343 = vsel %vm274, %v270, 0
      %345 = vmatprep.subr.bf16.mxu0 %v296
      %346 = vmatpush1.bf16.msra.mxu0 %v293
      %347 = vmatprep.subr.bf16.mxu0 %v320
      %348 = vmatpush1.bf16.msra.mxu0 %v317
      %349 = vmatprep.subr.bf16.mxu0 %v340
      %350 = vmatpush1.bf16.msra.mxu0 %v337
      %351 = vmatprep.subr.bf16.mxu0 0
      %352 = vmatpush1.bf16.msra.mxu0 0
      %353 = vmatprep.subr.bf16.mxu0 0
      %354 = vmatpush1.bf16.msra.mxu0 0
      %355 = vmatprep.subr.bf16.mxu0 0
      %356 = vmatpush1.bf16.msra.mxu0 0
      %357 = vmatprep.subr.bf16.mxu0 0
      %358 = vmatpush1.bf16.msra.mxu0 0
      %359 = vmatprep.subr.bf16.mxu0 0
      %360 = vmatpush1.bf16.msra.mxu0 0
      %361 = vmatprep.subr.bf16.mxu0 0
      %362 = vmatpush1.bf16.msra.mxu0 0
      %363 = vmatprep.subr.bf16.mxu0 0
      %364 = vmatpush1.bf16.msra.mxu0 0
      %365 = vmatprep.subr.bf16.mxu0 0
      %366 = vmatpush1.bf16.msra.mxu0 0
      %367 = vmatprep.subr.bf16.mxu0 0
      %368 = vmatpush1.bf16.msra.mxu0 0
      %369 = vmatprep.subr.bf16.mxu0 0
      %370 = vmatpush1.bf16.msra.mxu0 0
      %371 = vmatprep.subr.bf16.mxu0 0
      %372 = vmatpush1.bf16.msra.mxu0 0
      %373 = vmatprep.subr.bf16.mxu0 0
      %374 = vmatpush1.bf16.msra.mxu0 0
      %375 = vmatprep.subr.bf16.mxu0 0
      %376 = vmatpush1.bf16.msra.mxu0 0
      %377 = vmatprep.mubr.bf16.mxu0 0
      %378 = vmatmul.mubr.bf16.gmra.mrb[0].mxu0 %v334
      %v379 = vpop.f32.mrb[0].mxu0
      %v380 = vadd.f32 %v330, %v379
      %v381 = vpop.f32.mrb[0].mxu0
      %v382 = vadd.f32 %v330, %v381
      %v383 = vpop.f32.mrb[0].mxu0
      %v384 = vpop.f32.mrb[0].mxu0
      %385 = vdwg.mxu0
      %386 = vmatprep.subr.bf16.mxu0 0
      %387 = vmatpush1.bf16.msra.mxu0 %v299
      %388 = vmatprep.subr.bf16.mxu0 0
      %389 = vmatpush1.bf16.msra.mxu0 %v323
      %390 = vmatprep.subr.bf16.mxu0 0
      %391 = vmatpush1.bf16.msra.mxu0 %v343
      %392 = vmatprep.subr.bf16.mxu0 0
      %393 = vmatpush1.bf16.msra.mxu0 0
      %394 = vmatprep.subr.bf16.mxu0 0
      %395 = vmatpush1.bf16.msra.mxu0 0
      %396 = vmatprep.subr.bf16.mxu0 0
      %397 = vmatpush1.bf16.msra.mxu0 0
      %398 = vmatprep.subr.bf16.mxu0 0
      %399 = vmatpush1.bf16.msra.mxu0 0
      %400 = vmatprep.subr.bf16.mxu0 0
      %401 = vmatpush1.bf16.msra.mxu0 0
      %402 = vmatprep.subr.bf16.mxu0 0
      %403 = vmatpush1.bf16.msra.mxu0 0
      %404 = vmatprep.subr.bf16.mxu0 0
      %405 = vmatpush1.bf16.msra.mxu0 0
      %406 = vmatprep.subr.bf16.mxu0 0
      %407 = vmatpush1.bf16.msra.mxu0 0
      %408 = vmatprep.subr.bf16.mxu0 0
      %409 = vmatpush1.bf16.msra.mxu0 0
      %410 = vmatprep.subr.bf16.mxu0 0
      %411 = vmatpush1.bf16.msra.mxu0 0
      %412 = vmatprep.subr.bf16.mxu0 0
      %413 = vmatpush1.bf16.msra.mxu0 0
      %414 = vmatprep.subr.bf16.mxu0 0
      %415 = vmatpush1.bf16.msra.mxu0 0
      %416 = vmatprep.subr.bf16.mxu0 0
      %417 = vmatpush1.bf16.msra.mxu0 0
      %418 = vmatprep.mubr.bf16.mxu0 0
      %419 = vmatmul.mubr.bf16.gmra.mrb[0].mxu0 %v334
      %v420 = vpop.f32.mrb[0].mxu0
      %v421 = vadd.f32 %v330, %v420
      %v422 = vpop.f32.mrb[0].mxu0
      %v423 = vpop.f32.mrb[0].mxu0
      %v424 = vpop.f32.mrb[0].mxu0
      %425 = vdwg.mxu0
      %v426 = vmax.f32 %v380, 0.0
      %v427 = vmax.f32 %v382, 0.0
      %v428 = vmax.f32 %v421, 0.0
      %429 = vst [vmem:[%s170] sm:$0xff] %v426
      %430 = vst [vmem:[%s170 + $0x8] sm:$0xff] %v427
      %vm431 = vcmask 261120
      %432 = vst.msk [vmem:[%s170 + $0x10] sm:$0xff] %vm431, %v428
      %p433 = scmp.lt.s32.totalorder %s14, 1
      %s434 = scalar_select %p433, %s14, 1
      %s435 = smul.addr %s434, 3
      %s436 = smul.addr %s435, 8
      %s437 = scalar_lea.vmem %s3, %s436
      // Predicated region
      $region33: #{conv2d_block_forward.1} parent=31 // pred_check
        %p438 = pneg %p100
      $region34: #{conv2d_block_forward.1} parent=31 // pred_check_branch
        %440 = sbr.rel (%p438) target = $region36
      $region35: #{conv2d_block_forward.1} parent=31 // pred_region
        _
      $region36: #{conv2d_block_forward.1} parent=31 // pred_fallthru
        _
    $region32: #{conv2d_block_forward.1} parent=5 // pred_fallthru
      _
    %p441 = scmp.le.s32.totalorder 2, %s9
    // Predicated region
    $region37: #{conv2d_block_forward.1} parent=5 // pred_check
      %p442 = pneg %p441
    $region38: #{conv2d_block_forward.1} parent=5 // pred_check_branch
      %444 = sbr.rel (%p442) target = $region40
    $region39: #{conv2d_block_forward.1} parent=5 // pred_region
      %s445 = ssub.s32 %s9, 2
      // Predicated region
      $region41: #{conv2d_block_forward.1} parent=39 // pred_check
        %p446 = pneg %p106
      $region42: #{conv2d_block_forward.1} parent=39 // pred_check_branch
        %448 = sbr.rel (%p446) target = $region44
      $region43: #{conv2d_block_forward.1} parent=39 // pred_region
        %p449 = scmp.lt.s32.totalorder %s15, 1
        %s450 = scalar_select %p449, %s15, 1
        %s451 = smul.addr %s450, 3
        %s452 = smul.addr %s451, 8
        %s453 = scalar_lea.vmem %s3, %s452
      $region44: #{conv2d_block_forward.1} parent=39 // pred_fallthru
        _
    $region40: #{conv2d_block_forward.1} parent=5 // pred_fallthru
      _
  $region6: #{conv2d_block_forward.1} parent=0 // loop_footer
    %s13 = sadd.s32 1, %s9
  $region7: #{conv2d_block_forward.1} parent=0 // loop_footer_branch
    %8 = sbr.rel target = $region3
  $region8: #{conv2d_block_forward.1} parent=0 // loop_exit
    _

</llo_original>
